<compile_context>
chip_gen: v6e
topology: v6e:2x2x1
jax: 0.10.0
libtpu: 0.0.40
codegen_flags: <defaults>
</compile_context>

<pallas_src>
import functools

import jax
import jax.numpy as jnp
from jax.experimental import pallas as pl
from jax.experimental.pallas import tpu as pltpu

BN_EPS = 1e-5
NORM_CLAMP = 1e-8


def bn_partial_kernel(x_ref, gamma_ref, beta_ref, y_ref, part_ref):
    """Per-feature-tile BatchNorm1d (training-mode batch stats) + row partial sq-sums."""
    x = x_ref[...].astype(jnp.float32)            # [N, TF]
    n, tf = x.shape
    inv_n = jnp.float32(1.0 / n)

    # --- column statistics in a single sweep (sum and sum of squares) ---
    if n >= 256:
        # Large batch: offload both column reductions to the otherwise-idle MXU.
        ones_n = jnp.ones((1, n), dtype=jnp.float32)
        sum_x = jnp.dot(ones_n, x, preferred_element_type=jnp.float32)       # [1, TF]
        sum_x2 = jnp.dot(ones_n, x * x, preferred_element_type=jnp.float32)  # [1, TF]
    else:
        sum_x = jnp.sum(x, axis=0, keepdims=True)
        sum_x2 = jnp.sum(x * x, axis=0, keepdims=True)

    mean = sum_x * inv_n
    var = jnp.maximum(sum_x2 * inv_n - mean * mean, 0.0)      # biased variance, clamped

    # --- fold gamma and the mean shift into one scale/shift row ([1, TF] work) ---
    scale = gamma_ref[...].astype(jnp.float32) * jax.lax.rsqrt(var + BN_EPS)
    shift = beta_ref[...].astype(jnp.float32) - mean * scale
    y = x * scale + shift                                     # [N, TF]
    y_ref[...] = y.astype(y_ref.dtype)

    # --- per-row partial squared sums for this feature tile ---
    if tf >= 512:
        ones_f = jnp.ones((tf, 1), dtype=jnp.float32)
        row_sq = jnp.dot(y * y, ones_f, preferred_element_type=jnp.float32)  # [N, 1]
    else:
        row_sq = jnp.sum(y * y, axis=1, keepdims=True)                       # [N, 1]
    part_ref[...] = row_sq.reshape(1, n, 1)


def row_norm_kernel(part_ref, y_ref, o_ref):
    """Row-wise L2 normalization: out = y / clamp(sqrt(sum_j y^2), 1e-8)."""
    sq_sum = jnp.sum(part_ref[...], axis=0)                   # [N, 1]
    # 1 / clamp(sqrt(s), 1e-8) == min(rsqrt(s), 1e8); rsqrt(0)=inf is clamped too.
    inv_norm = jnp.minimum(jax.lax.rsqrt(sq_sum), jnp.float32(1.0 / NORM_CLAMP))
    o_ref[...] = (y_ref[...].astype(jnp.float32) * inv_norm).astype(o_ref.dtype)


def _pick_tile_f(f):
    # Prefer lane-dense tiles (multiple of 128, >= 512 when the width allows).
    for cand in (512, 256, 128):
        if f % cand == 0:
            return cand
    return f  # odd widths: single full-width tile


@functools.partial(jax.jit, static_argnames=("tile_f",))
def etf_classifier_forward(x, gamma, beta, *, tile_f=None):
    """x: [N, feat_in] float32; gamma/beta: [feat_in] BN affine params."""
    n, f = x.shape
    if tile_f is None:
        tile_f = _pick_tile_f(f)
    assert f % tile_f == 0
    num_tiles = f // tile_f

    gamma2d = gamma.reshape(1, f).astype(jnp.float32)
    beta2d = beta.reshape(1, f).astype(jnp.float32)

    # Explicit VMEM budget with headroom, capped so it is valid on v7x (64 MiB).
    bytes_per_el = x.dtype.itemsize
    block_bytes = n * tile_f * bytes_per_el
    vmem_need = 2 * 2 * block_bytes + 2 * num_tiles * n * 4 + 4 * tile_f * 4
    cparams = pltpu.CompilerParams(
        dimension_semantics=("parallel",),
        vmem_limit_bytes=int(min(max(2 * vmem_need, 32 * 2**20), 64 * 2**20)),
    )

    # Pass 1: per-feature-tile BatchNorm + per-row partial squared sums.
    y, partials = pl.pallas_call(
        bn_partial_kernel,
        grid=(num_tiles,),
        in_specs=[
            pl.BlockSpec((n, tile_f), lambda j: (0, j)),
            pl.BlockSpec((1, tile_f), lambda j: (0, j)),
            pl.BlockSpec((1, tile_f), lambda j: (0, j)),
        ],
        out_specs=[
            pl.BlockSpec((n, tile_f), lambda j: (0, j)),
            pl.BlockSpec((1, n, 1), lambda j: (j, 0, 0)),
        ],
        out_shape=[
            jax.ShapeDtypeStruct((n, f), x.dtype),
            jax.ShapeDtypeStruct((num_tiles, n, 1), jnp.float32),
        ],
        input_output_aliases={0: 0},  # reuse x's HBM buffer for y
        compiler_params=cparams,
    )(x, gamma2d, beta2d)

    # Pass 2: row-wise L2 normalization (partials stay resident; y tiles stream).
    out = pl.pallas_call(
        row_norm_kernel,
        grid=(num_tiles,),
        in_specs=[
            pl.BlockSpec((num_tiles, n, 1), lambda j: (0, 0, 0)),
            pl.BlockSpec((n, tile_f), lambda j: (0, j)),
        ],
        out_specs=pl.BlockSpec((n, tile_f), lambda j: (0, j)),
        out_shape=jax.ShapeDtypeStruct((n, f), x.dtype),
        input_output_aliases={1: 0},  # reuse y's HBM buffer for the output
        compiler_params=cparams,
    )(partials, y)
    return out


def make_etf_params(feat_in, num_classes, key):
    """Deterministic __init__-style parameter construction (plain JAX glue)."""
    a = jax.random.uniform(key, (feat_in, num_classes), dtype=jnp.float32)
    p, _ = jnp.linalg.qr(a)
    i = jnp.eye(num_classes, dtype=jnp.float32)
    one = jnp.ones((num_classes, num_classes), dtype=jnp.float32)
    scale = jnp.sqrt(num_classes / (num_classes - 1.0))
    ori_m = scale * (p @ (i - one / num_classes))   # the ETF classifier matrix
    gamma = jnp.ones((feat_in,), dtype=jnp.float32)
    beta = jnp.zeros((feat_in,), dtype=jnp.float32)
    return ori_m, gamma, beta
    # TODO(synk): gen_sparse_ETF (10000-step Adam sparsification loop) is a
    # training procedure, not part of the forward pass — not translated.


def _reference(x, gamma, beta):
    mean = jnp.mean(x, axis=0, keepdims=True)
    var = jnp.mean((x - mean) ** 2, axis=0, keepdims=True)
    y = (x - mean) / jnp.sqrt(var + BN_EPS) * gamma + beta
    return y / jnp.maximum(jnp.sqrt(jnp.sum(y ** 2, axis=1, keepdims=True)), NORM_CLAMP)


if __name__ == "__main__":
    key = jax.random.PRNGKey(0)
    k_x, k_p, k_x2, k_g, k_b = jax.random.split(key, 5)

    # --- Test 1: module-fidelity shapes (default BN affine params). ---
    batch, feat_in, num_classes = 8, 128, 16
    x = jax.random.normal(k_x, (batch, feat_in), dtype=jnp.float32)
    ori_m, gamma, beta = make_etf_params(feat_in, num_classes, k_p)
    ref = _reference(x, gamma, beta)               # computed before the (aliased) call
    out = jax.block_until_ready(etf_classifier_forward(x, gamma, beta))
    assert jnp.allclose(out, ref, atol=1e-5), float(jnp.max(jnp.abs(out - ref)))

    # --- Test 2: multi-tile grid (2 feature tiles) + non-trivial gamma/beta. ---
    batch2, feat2 = 8, 256
    x2 = jax.random.normal(k_x2, (batch2, feat2), dtype=jnp.float32)
    gamma2 = 1.0 + 0.1 * jax.random.normal(k_g, (feat2,), dtype=jnp.float32)
    beta2 = 0.1 * jax.random.normal(k_b, (feat2,), dtype=jnp.float32)
    ref2 = _reference(x2, gamma2, beta2)
    out2 = jax.block_until_ready(etf_classifier_forward(x2, gamma2, beta2, tile_f=128))
    assert jnp.allclose(out2, ref2, atol=1e-5), float(jnp.max(jnp.abs(out2 - ref2)))

    print("KERNEL_OK")
</pallas_src>

<mosaic_0001>
module attributes {stable_mosaic.version = 11 : i64} {
  func.func @row_norm_kernel(%arg0: i32, %arg1: memref<1x8x1xf32, #tpu.memory_space<vmem>>, %arg2: memref<8x128xf32, #tpu.memory_space<vmem>>, %arg3: memref<8x128xf32, #tpu.memory_space<vmem>>) attributes {dimension_semantics = [#tpu.dimension_semantics<parallel>], iteration_bounds = array<i64: 1>, scalar_prefetch = 0 : i64, scratch_operands = 0 : i64, tpu.core_type = #tpu.core_type<tc>, window_params = [{pipeline_mode = #tpu.pipeline_mode<synchronous>, transform_indices = @transform_0, window_bounds = array<i64: 1, 8, 1>}, {transform_indices = @transform_1, window_bounds = array<i64: 8, 128>}, {transform_indices = @transform_2, window_bounds = array<i64: 8, 128>}]} {
    %c0 = arith.constant 0 : index
    %c0_0 = arith.constant 0 : index
    %c0_1 = arith.constant 0 : index
    %0 = vector.load %arg1[%c0, %c0_0, %c0_1] : memref<1x8x1xf32, #tpu.memory_space<vmem>>, vector<1x8x1xf32>
    %cst = arith.constant dense<0.000000e+00> : vector<8x1xf32>
    %1 = vector.multi_reduction <add>, %0, %cst [0] : vector<1x8x1xf32> to vector<8x1xf32>
    %2 = math.rsqrt %1 : vector<8x1xf32>
    %cst_2 = arith.constant 1.000000e+08 : f32
    %3 = vector.broadcast %cst_2 : f32 to vector<8x1xf32>
    %4 = arith.minimumf %2, %3 : vector<8x1xf32>
    %c0_3 = arith.constant 0 : index
    %c0_4 = arith.constant 0 : index
    %5 = vector.load %arg2[%c0_3, %c0_4] : memref<8x128xf32, #tpu.memory_space<vmem>>, vector<8x128xf32>
    %6 = vector.broadcast %4 : vector<8x1xf32> to vector<8x128xf32>
    %7 = arith.mulf %5, %6 : vector<8x128xf32>
    %c0_5 = arith.constant 0 : index
    %c0_6 = arith.constant 0 : index
    %8 = vector.load %arg3[%c0_5, %c0_6] : memref<8x128xf32, #tpu.memory_space<vmem>>, vector<8x128xf32>
    tpu.vector_store %arg3[%c0_5, %c0_6], %7 {strides = array<i32>} : memref<8x128xf32, #tpu.memory_space<vmem>>, vector<8x128xf32>,
    return
  }
  func.func @transform_0(%arg0: i32) -> (i32, i32, i32) {
    %c0_i32 = arith.constant 0 : i32
    %c0_i32_0 = arith.constant 0 : i32
    %c0_i32_1 = arith.constant 0 : i32
    %c0_i32_2 = arith.constant 0 : i32
    return %c0_i32, %c0_i32_0, %c0_i32_1 : i32, i32, i32
  }
  func.func @transform_1(%arg0: i32) -> (i32, i32) {
    %c0_i32 = arith.constant 0 : i32
    %c0_i32_0 = arith.constant 0 : i32
    return %c0_i32, %arg0 : i32, i32
  }
  func.func @transform_2(%arg0: i32) -> (i32, i32) {
    %c0_i32 = arith.constant 0 : i32
    %c0_i32_0 = arith.constant 0 : i32
    return %c0_i32, %arg0 : i32, i32
  }
}

module attributes {stable_mosaic.version = 11 : i64} {
  func.func @bn_partial_kernel(%arg0: i32, %arg1: memref<8x128xf32, #tpu.memory_space<vmem>>, %arg2: memref<1x128xf32, #tpu.memory_space<vmem>>, %arg3: memref<1x128xf32, #tpu.memory_space<vmem>>, %arg4: memref<8x128xf32, #tpu.memory_space<vmem>>, %arg5: memref<1x8x1xf32, #tpu.memory_space<vmem>>) attributes {dimension_semantics = [#tpu.dimension_semantics<parallel>], iteration_bounds = array<i64: 1>, scalar_prefetch = 0 : i64, scratch_operands = 0 : i64, tpu.core_type = #tpu.core_type<tc>, window_params = [{transform_indices = @transform_0, window_bounds = array<i64: 8, 128>}, {transform_indices = @transform_1, window_bounds = array<i64: 1, 128>}, {transform_indices = @transform_2, window_bounds = array<i64: 1, 128>}, {transform_indices = @transform_3, window_bounds = array<i64: 8, 128>}, {transform_indices = @transform_4, window_bounds = array<i64: 1, 8, 1>}]} {
    %c0 = arith.constant 0 : index
    %c0_0 = arith.constant 0 : index
    %0 = vector.load %arg1[%c0, %c0_0] : memref<8x128xf32, #tpu.memory_space<vmem>>, vector<8x128xf32>
    %cst = arith.constant dense<0.000000e+00> : vector<128xf32>
    %1 = vector.multi_reduction <add>, %0, %cst [0] : vector<8x128xf32> to vector<128xf32>
    %2 = vector.shape_cast %1 : vector<128xf32> to vector<1x128xf32>
    %3 = arith.mulf %0, %0 : vector<8x128xf32>
    %cst_1 = arith.constant dense<0.000000e+00> : vector<128xf32>
    %4 = vector.multi_reduction <add>, %3, %cst_1 [0] : vector<8x128xf32> to vector<128xf32>
    %5 = vector.shape_cast %4 : vector<128xf32> to vector<1x128xf32>
    %cst_2 = arith.constant 1.250000e-01 : f32
    %6 = vector.broadcast %cst_2 : f32 to vector<1x128xf32>
    %7 = arith.mulf %2, %6 : vector<1x128xf32>
    %cst_3 = arith.constant 1.250000e-01 : f32
    %8 = vector.broadcast %cst_3 : f32 to vector<1x128xf32>
    %9 = arith.mulf %5, %8 : vector<1x128xf32>
    %10 = arith.mulf %7, %7 : vector<1x128xf32>
    %11 = arith.subf %9, %10 : vector<1x128xf32>
    %cst_4 = arith.constant 0.000000e+00 : f32
    %12 = vector.broadcast %cst_4 : f32 to vector<1x128xf32>
    %13 = arith.maximumf %11, %12 : vector<1x128xf32>
    %c0_5 = arith.constant 0 : index
    %c0_6 = arith.constant 0 : index
    %14 = vector.load %arg2[%c0_5, %c0_6] : memref<1x128xf32, #tpu.memory_space<vmem>>, vector<1x128xf32>
    %cst_7 = arith.constant 9.99999974E-6 : f32
    %15 = vector.broadcast %cst_7 : f32 to vector<1x128xf32>
    %16 = arith.addf %13, %15 : vector<1x128xf32>
    %17 = math.rsqrt %16 : vector<1x128xf32>
    %18 = arith.mulf %14, %17 : vector<1x128xf32>
    %c0_8 = arith.constant 0 : index
    %c0_9 = arith.constant 0 : index
    %19 = vector.load %arg3[%c0_8, %c0_9] : memref<1x128xf32, #tpu.memory_space<vmem>>, vector<1x128xf32>
    %20 = arith.mulf %7, %18 : vector<1x128xf32>
    %21 = arith.subf %19, %20 : vector<1x128xf32>
    %22 = vector.broadcast %18 : vector<1x128xf32> to vector<8x128xf32>
    %23 = arith.mulf %0, %22 : vector<8x128xf32>
    %24 = vector.broadcast %21 : vector<1x128xf32> to vector<8x128xf32>
    %25 = arith.addf %23, %24 : vector<8x128xf32>
    %c0_10 = arith.constant 0 : index
    %c0_11 = arith.constant 0 : index
    %26 = vector.load %arg4[%c0_10, %c0_11] : memref<8x128xf32, #tpu.memory_space<vmem>>, vector<8x128xf32>
    tpu.vector_store %arg4[%c0_10, %c0_11], %25 {strides = array<i32>} : memref<8x128xf32, #tpu.memory_space<vmem>>, vector<8x128xf32>,
    %27 = arith.mulf %25, %25 : vector<8x128xf32>
    %cst_12 = arith.constant dense<0.000000e+00> : vector<8xf32>
    %28 = vector.multi_reduction <add>, %27, %cst_12 [1] : vector<8x128xf32> to vector<8xf32>
    %29 = vector.shape_cast %28 : vector<8xf32> to vector<8x1xf32>
    %30 = vector.shape_cast %29 : vector<8x1xf32> to vector<1x8x1xf32>
    %c0_13 = arith.constant 0 : index
    %c0_14 = arith.constant 0 : index
    %c0_15 = arith.constant 0 : index
    %31 = vector.load %arg5[%c0_13, %c0_14, %c0_15] : memref<1x8x1xf32, #tpu.memory_space<vmem>>, vector<1x8x1xf32>
    tpu.vector_store %arg5[%c0_13, %c0_14, %c0_15], %30 {strides = array<i32>} : memref<1x8x1xf32, #tpu.memory_space<vmem>>, vector<1x8x1xf32>,
    return
  }
  func.func @transform_0(%arg0: i32) -> (i32, i32) {
    %c0_i32 = arith.constant 0 : i32
    %c0_i32_0 = arith.constant 0 : i32
    return %c0_i32, %arg0 : i32, i32
  }
  func.func @transform_1(%arg0: i32) -> (i32, i32) {
    %c0_i32 = arith.constant 0 : i32
    %c0_i32_0 = arith.constant 0 : i32
    return %c0_i32, %arg0 : i32, i32
  }
  func.func @transform_2(%arg0: i32) -> (i32, i32) {
    %c0_i32 = arith.constant 0 : i32
    %c0_i32_0 = arith.constant 0 : i32
    return %c0_i32, %arg0 : i32, i32
  }
  func.func @transform_3(%arg0: i32) -> (i32, i32) {
    %c0_i32 = arith.constant 0 : i32
    %c0_i32_0 = arith.constant 0 : i32
    return %c0_i32, %arg0 : i32, i32
  }
  func.func @transform_4(%arg0: i32) -> (i32, i32, i32) {
    %c0_i32 = arith.constant 0 : i32
    %c0_i32_0 = arith.constant 0 : i32
    %c0_i32_1 = arith.constant 0 : i32
    return %arg0, %c0_i32, %c0_i32_0 : i32, i32, i32
  }
}

</mosaic_0001>

<llo_original>
// kernel: etf_classifier_forward.2
$region0: #{etf_classifier_forward.2}
  #allocation0 [shape = 'u32[]', space=smem, size = 0x4, offset = 0x4, fixed_abs, tag = 'smem constant byte address 0x4 - core index']
  #allocation1 [shape = 'u32[144,128]{1,0:T(1,128)}', space=vmem, size = 0x12000, scoped, tag = 'internal scratch']
  %s0 = inlined_call_operand.vmem [shape: f32[8,128], index: 0, kind: input, shape index: {}, may-alias: {0,3}]
  %s1 = inlined_call_operand.vmem [shape: f32[1,128], index: 1, kind: input, shape index: {}]
  %s2 = inlined_call_operand.vmem [shape: f32[1,128], index: 2, kind: input, shape index: {}]
  %s3 = inlined_call_operand.vmem [shape: f32[8,128], index: 3, kind: output, shape index: {0}, may-alias: {0,3}]
  %s4 = inlined_call_operand.vmem [shape: f32[1,8,1], index: 4, kind: output, shape index: {1}]
  %5 = xla_tuple %s3, %s4
  %s6 = sld [smem:[#allocation0]]
  $region30: #{etf_classifier_forward.2} parent=0
    _
  %s8 = ssub.s32 1, %s6
  %s9 = scalar_select 0, %s8, %s6
  // Predicated region
  $region2: #{etf_classifier_forward.2} parent=0 // pred_check
    _
  $region3: #{etf_classifier_forward.2} parent=0 // pred_check_branch
    %11 = sbr.rel (0) target = $region5
  $region4: #{etf_classifier_forward.2} parent=0 // pred_region
    _
  $region5: #{etf_classifier_forward.2} parent=0 // pred_fallthru
    _
  // Predicated region
  $region6: #{etf_classifier_forward.2} parent=0 // pred_check
    _
  $region7: #{etf_classifier_forward.2} parent=0 // pred_check_branch
    %13 = sbr.rel (0) target = $region9
  $region8: #{etf_classifier_forward.2} parent=0 // pred_region
    _
  $region9: #{etf_classifier_forward.2} parent=0 // pred_fallthru
    _
  // Predicated region
  $region10: #{etf_classifier_forward.2} parent=0 // pred_check
    _
  $region11: #{etf_classifier_forward.2} parent=0 // pred_check_branch
    %15 = sbr.rel (0) target = $region13
  $region12: #{etf_classifier_forward.2} parent=0 // pred_region
    _
  $region13: #{etf_classifier_forward.2} parent=0 // pred_fallthru
    _
  %v16 = vld [vmem:[%s0] sm:$0xff]
  %v17 = vrot.slane %v16, 4
  %v18 = vadd.f32 %v16, %v17
  %v19 = vrot.slane %v18, 2
  %v20 = vadd.f32 %v18, %v19
  %v21 = vrot.slane %v20, 1
  %v22 = vadd.f32 %v20, %v21
  %v23 = vmul.f32 %v16, %v16
  %v24 = vrot.slane %v23, 4
  %v25 = vadd.f32 %v23, %v24
  %v26 = vrot.slane %v25, 2
  %v27 = vadd.f32 %v25, %v26
  %v28 = vrot.slane %v27, 1
  %v29 = vadd.f32 %v27, %v28
  %v30 = vmul.f32 %v22, 0.125
  %v31 = vmul.f32 %v29, 0.125
  %v32 = vmul.f32 %v30, %v30
  %v33 = vsub.f32 %v31, %v32
  %v34 = vmax.f32 %v33, 0.0
  %v35 = vld [vmem:[%s1] sm:$0x1]
  %v36 = vadd.f32 %v34, 1e-05
  %v37 = vrsqrt.pop %v36
  %v38 = vmul.f32 %v35, %v37
  %v39 = vld [vmem:[%s2] sm:$0x1]
  %v40 = vmul.f32 %v30, %v38
  %v41 = vsub.f32 %v39, %v40
  %v43 = vlaneseq
  %v44 = vshrl.u32 %v43, 7
  %v45 = vsub.s32 0, %v44
  %v46 = vrot.slane %v38, %v45
  %v48 = vmul.f32 %v16, %v46
  %v50 = vlaneseq
  %v51 = vshrl.u32 %v50, 7
  %v52 = vsub.s32 0, %v51
  %v53 = vrot.slane %v41, %v52
  %v55 = vadd.f32 %v48, %v53
  %56 = vst [vmem:[%s3] sm:$0xff] %v55
  %v57 = vmul.f32 %v55, %v55
  %58 = vadd.xlane.f32.xlu0 %v57
  %v59 = vpop.xlane.xlu0 %58
  %vm60 = vcmask 7168
  %61 = vst.msk [vmem:[%s4] sm:$0xff] %vm60, %v59
  // Predicated region
  $region14: #{etf_classifier_forward.2} parent=0 // pred_check
    _
  $region15: #{etf_classifier_forward.2} parent=0 // pred_check_branch
    %63 = sbr.rel (0) target = $region17
  $region16: #{etf_classifier_forward.2} parent=0 // pred_region
    _
  $region17: #{etf_classifier_forward.2} parent=0 // pred_fallthru
    _
  // Predicated region
  $region18: #{etf_classifier_forward.2} parent=0 // pred_check
    _
  $region19: #{etf_classifier_forward.2} parent=0 // pred_check_branch
    %65 = sbr.rel (0) target = $region21
  $region20: #{etf_classifier_forward.2} parent=0 // pred_region
    _
  $region21: #{etf_classifier_forward.2} parent=0 // pred_fallthru
    _
  // Predicated region
  $region22: #{etf_classifier_forward.2} parent=0 // pred_check
    _
  $region23: #{etf_classifier_forward.2} parent=0 // pred_check_branch
    %67 = sbr.rel (0) target = $region25
  $region24: #{etf_classifier_forward.2} parent=0 // pred_region
    _
  $region25: #{etf_classifier_forward.2} parent=0 // pred_fallthru
    _
  // Predicated region
  $region26: #{etf_classifier_forward.2} parent=0 // pred_check
    _
  $region27: #{etf_classifier_forward.2} parent=0 // pred_check_branch
    %69 = sbr.rel (0) target = $region29
  $region28: #{etf_classifier_forward.2} parent=0 // pred_region
    _
  $region29: #{etf_classifier_forward.2} parent=0 // pred_fallthru
    _

// kernel: etf_classifier_forward.3
$region0: #{etf_classifier_forward.3}
  #allocation0 [shape = 'u32[]', space=smem, size = 0x4, offset = 0x4, fixed_abs, tag = 'smem constant byte address 0x4 - core index']
  #allocation1 [shape = 'u32[144,128]{1,0:T(1,128)}', space=vmem, size = 0x12000, scoped, tag = 'internal scratch']
  %s0 = inlined_call_operand.vmem [shape: f32[1,8,1], index: 0, kind: input, shape index: {}]
  %s1 = inlined_call_operand.hbm [shape: f32[8,128], index: 1, kind: input, shape index: {}, may-alias: {1,2}]
  %s2 = inlined_call_operand.hbm [shape: f32[8,128], index: 2, kind: output, shape index: {}, may-alias: {1,2}]
  %s3 = sld [smem:[#allocation0]]
  $region22: #{etf_classifier_forward.3} parent=0
    _
  %s5 = ssub.s32 1, %s3
  %s6 = scalar_select 0, %s5, %s3
  $region1: #{etf_classifier_forward.3} parent=0
    #allocation2 [shape = 'u8[4096]{0}', space=vmem, size = 0x1000, scoped, tag = 'input window, operand 1, single buffered']
    #allocation3 [shape = 's32[1]{0}', space=sflag, size = 0x4, scoped, tag = 'scoped memory for etf_classifier_forward.3']
    #allocation4 [shape = 's32[1]{0}', space=sflag, size = 0x4, scoped, tag = 'scoped memory for etf_classifier_forward.3']
    #allocation5 [shape = 'u8[4096]{0}', space=vmem, size = 0x1000, scoped, tag = 'output window, operand 0, single buffered']
    %7 = vsyncpa [#allocation3], 0
    %8 = vsyncpa [#allocation4], 0
    // Predicated region
    $region2: #{etf_classifier_forward.3} parent=1 // pred_check
      _
    $region3: #{etf_classifier_forward.3} parent=1 // pred_check_branch
      %10 = sbr.rel (0) target = $region5
    $region4: #{etf_classifier_forward.3} parent=1 // pred_region
      _
    $region5: #{etf_classifier_forward.3} parent=1 // pred_fallthru
      _
    // Predicated region
    $region6: #{etf_classifier_forward.3} parent=1 // pred_check
      _
    $region7: #{etf_classifier_forward.3} parent=1 // pred_check_branch
      %12 = sbr.rel (0) target = $region9
    $region8: #{etf_classifier_forward.3} parent=1 // pred_region
      %s14 = ssub.s32 128, 128
      %15 = vsyncadd [#allocation3], %s14
      %s17 = sshll.u32 [#allocation2], 4
      %s18 = int_to_ptr.vmem [resolvable:$true] %s17
      %20 = dma.hbm_to_vmem [thread:$0]  %s1, 128, %s18, [#allocation3]
    $region9: #{etf_classifier_forward.3} parent=1 // pred_fallthru
      _
    // Predicated region
    $region10: #{etf_classifier_forward.3} parent=1 // pred_check
      _
    $region11: #{etf_classifier_forward.3} parent=1 // pred_check_branch
      %22 = sbr.rel (0) target = $region13
    $region12: #{etf_classifier_forward.3} parent=1 // pred_region
      %23 = dma.done [#allocation3], 128
    $region13: #{etf_classifier_forward.3} parent=1 // pred_fallthru
      _
    %v24 = vld [vmem:[%s0] sm:$0xff]
    %v25 = vadd.f32 %v24, 0.0
    %v26 = vrsqrt.pop %v25
    %v27 = vmin.f32 %v26, 1e+08
    %v28 = vld [vmem:[#allocation2] sm:$0xff]
    %30 = vset.pattern.permute.xlu0 0
    %31 = vperm.xlu0 %30, %v27
    %v32 = vpop.permute.xlu0 %31
    %v34 = vmul.f32 %v28, %v32
    %35 = vst [vmem:[#allocation5] sm:$0xff] %v34
    // Predicated region
    $region14: #{etf_classifier_forward.3} parent=1 // pred_check
      _
    $region15: #{etf_classifier_forward.3} parent=1 // pred_check_branch
      %37 = sbr.rel (0) target = $region17
    $region16: #{etf_classifier_forward.3} parent=1 // pred_region
      %s39 = ssub.s32 128, 128
      %40 = vsyncadd [#allocation4], %s39
      %s42 = sshll.u32 [#allocation5], 4
      %s43 = int_to_ptr.vmem [resolvable:$true] %s42
      %45 = dma.vmem_to_hbm [thread:$0]  %s43, 128, %s2, [#allocation4]
    $region17: #{etf_classifier_forward.3} parent=1 // pred_fallthru
      _
    // Predicated region
    $region18: #{etf_classifier_forward.3} parent=1 // pred_check
      _
    $region19: #{etf_classifier_forward.3} parent=1 // pred_check_branch
      %47 = sbr.rel (0) target = $region21
    $region20: #{etf_classifier_forward.3} parent=1 // pred_region
      %48 = dma.done [#allocation4], 128
    $region21: #{etf_classifier_forward.3} parent=1 // pred_fallthru
      _
    %49 = vsyncpa [#allocation3], 1
    %50 = vsyncpa [#allocation4], 1

</llo_original>
